<compile_context>
chip_gen: v6e
topology: v6e:2x2x1
jax: 0.10.0
libtpu: 0.0.40
codegen_flags: <defaults>
</compile_context>

<pallas_src>
import functools

import jax
import jax.numpy as jnp
from jax.experimental import pallas as pl
from jax.experimental.pallas import tpu as pltpu


def _round_up(x, m):
    return ((x + m - 1) // m) * m


def _pad2d(a, shape):
    """Zero-pad a 2D array up to `shape` (no-op if already that shape)."""
    if tuple(a.shape) == tuple(shape):
        return a
    return jnp.zeros(shape, a.dtype).at[: a.shape[0], : a.shape[1]].set(a)


def _const_block_spec(shape, index_map, single_buffer):
    """BlockSpec for a block whose index never changes; optionally single-buffered."""
    if single_buffer and hasattr(pl, "Buffered"):
        try:
            return pl.BlockSpec(shape, index_map, pipeline_mode=pl.Buffered(1))
        except TypeError:
            pass  # this jax version's BlockSpec has no pipeline_mode kwarg
    return pl.BlockSpec(shape, index_map)


# --------------------------------------------------------------------------------------
# Kernels
# --------------------------------------------------------------------------------------
def _dense_embedding_fused_kernel(x_ref, w1_ref, b1_ref, w2_ref, b2_ref, o_ref):
    """Fast path: full weights resident, grid over row tiles only."""
    h = jnp.dot(x_ref[...], w1_ref[...], preferred_element_type=jnp.float32)
    h = jnp.maximum(h + b1_ref[...], 0.0)                              # bias + ReLU (f32)
    o = jnp.dot(h.astype(w2_ref.dtype), w2_ref[...],
                preferred_element_type=jnp.float32)
    o_ref[...] = (o + b2_ref[...]).astype(o_ref.dtype)


def _dense_embedding_htiled_kernel(x_ref, w1_ref, b1_ref, w2_ref, b2_ref, o_ref, acc_ref):
    """Hidden-dim tiled path: grid = (row_tiles, hidden_tiles); hidden is a reduction."""
    j = pl.program_id(1)

    h = jnp.dot(x_ref[...], w1_ref[...], preferred_element_type=jnp.float32)
    h = jnp.maximum(h + b1_ref[...], 0.0)
    contrib = jnp.dot(h.astype(w2_ref.dtype), w2_ref[...],
                      preferred_element_type=jnp.float32)

    @pl.when(j == 0)
    def _():
        acc_ref[...] = contrib + b2_ref[...]          # output bias added exactly once

    @pl.when(j != 0)
    def _():
        acc_ref[...] += contrib

    @pl.when(j == pl.num_programs(1) - 1)
    def _():
        o_ref[...] = acc_ref[...].astype(o_ref.dtype)


# --------------------------------------------------------------------------------------
# Wrapper
# --------------------------------------------------------------------------------------
@functools.partial(
    jax.jit,
    static_argnames=("tm", "hidden_tile", "single_buffer_weights", "compute_dtype",
                     "max_resident_weight_bytes"),
)
def dense_embedding_forward(x, w1, b1, w2, b2, *, tm=256, hidden_tile=512,
                            single_buffer_weights=True, compute_dtype=None,
                            max_resident_weight_bytes=8 * 1024 * 1024):
    """x: [..., input_size] -> [..., embedding_size].

    Weights are stored as (in_features, out_features) (== PyTorch Linear weight.T).
    """
    orig_shape = x.shape
    d_in = orig_shape[-1]
    x2d = x.reshape(-1, d_in)
    rows = x2d.shape[0]
    hidden = w1.shape[1]
    emb = w2.shape[1]
    out_dtype = x.dtype

    # Optional bf16 operands for the MXU (f32 accumulation kept in-kernel).
    if compute_dtype is not None:
        x2d = x2d.astype(compute_dtype)
        w1 = w1.astype(compute_dtype)
        w2 = w2.astype(compute_dtype)

    itemsize_x = jnp.dtype(x2d.dtype).itemsize
    itemsize_w = jnp.dtype(w1.dtype).itemsize
    itemsize_o = jnp.dtype(out_dtype).itemsize

    # --- lane-dense padding of the (small) weights / biases -------------------------
    emb_pad = _round_up(emb, 128)
    hid128 = _round_up(hidden, 128)
    weight_bytes = (d_in * hid128 + hid128 * emb_pad) * itemsize_w
    resident = weight_bytes <= max_resident_weight_bytes
    if resident:
        th = hid128                                 # one hidden tile = whole hidden dim
    else:
        th = _round_up(min(hidden_tile, hid128), 128)
    hid_pad = _round_up(hidden, th)
    n_htiles = hid_pad // th

    w1p = _pad2d(w1, (d_in, hid_pad))
    b1p = _pad2d(b1.reshape(1, -1), (1, hid_pad))
    w2p = _pad2d(w2, (hid_pad, emb_pad))
    b2p = _pad2d(b2.reshape(1, -1), (1, emb_pad))

    # --- row tiling ------------------------------------------------------------------
    tm_eff = max(8, min(tm, _round_up(rows, 8)))
    tm_eff = _round_up(tm_eff, 8)
    n_rtiles = pl.cdiv(rows, tm_eff)

    # --- VMEM budget (double-buffered inputs/outputs + f32 accumulator) --------------
    w_cols = hid_pad if resident else th
    vmem_need = (
        2 * tm_eff * max(d_in, 128) * itemsize_x          # x tile
        + 2 * tm_eff * emb_pad * itemsize_o               # out tile
        + 2 * (d_in * w_cols + w_cols * emb_pad) * itemsize_w   # W1 / W2 blocks
        + 2 * 8 * (w_cols + emb_pad) * 4                  # biases (sublane padded)
        + tm_eff * emb_pad * 4                            # accumulator scratch
    )
    vmem_limit = int(min(max(vmem_need + (8 << 20), 32 << 20), 64 << 20))

    cost = pl.CostEstimate(
        flops=int(2 * rows * (d_in * hid_pad + hid_pad * emb_pad)),
        transcendentals=0,
        bytes_accessed=int(
            x2d.size * itemsize_x
            + w1p.size * itemsize_w + w2p.size * itemsize_w
            + b1p.size * jnp.dtype(b1p.dtype).itemsize
            + b2p.size * jnp.dtype(b2p.dtype).itemsize
            + rows * emb_pad * itemsize_o
        ),
    )

    if resident:
        kernel = _dense_embedding_fused_kernel
        grid = (n_rtiles,)
        in_specs = [
            pl.BlockSpec((tm_eff, d_in), lambda i: (i, 0)),                     # x rows
            _const_block_spec((d_in, hid_pad), lambda i: (0, 0), single_buffer_weights),
            _const_block_spec((1, hid_pad), lambda i: (0, 0), single_buffer_weights),
            _const_block_spec((hid_pad, emb_pad), lambda i: (0, 0), single_buffer_weights),
            _const_block_spec((1, emb_pad), lambda i: (0, 0), single_buffer_weights),
        ]
        out_specs = pl.BlockSpec((tm_eff, emb_pad), lambda i: (i, 0))
        scratch = []
        dim_sem = ("parallel",)
    else:
        kernel = _dense_embedding_htiled_kernel
        grid = (n_rtiles, n_htiles)                       # reduction (hidden) axis last
        in_specs = [
            pl.BlockSpec((tm_eff, d_in), lambda i, j: (i, 0)),
            pl.BlockSpec((d_in, th), lambda i, j: (0, j)),
            pl.BlockSpec((1, th), lambda i, j: (0, j)),
            pl.BlockSpec((th, emb_pad), lambda i, j: (j, 0)),
            _const_block_spec((1, emb_pad), lambda i, j: (0, 0), single_buffer_weights),
        ]
        out_specs = pl.BlockSpec((tm_eff, emb_pad), lambda i, j: (i, 0))
        scratch = [pltpu.VMEM((tm_eff, emb_pad), jnp.float32)]
        dim_sem = ("parallel", "arbitrary")

    out = pl.pallas_call(
        kernel,
        out_shape=jax.ShapeDtypeStruct((rows, emb_pad), out_dtype),
        grid_spec=pltpu.PrefetchScalarGridSpec(
            num_scalar_prefetch=0,
            grid=grid,
            in_specs=in_specs,
            out_specs=out_specs,
            scratch_shapes=scratch,
        ),
        compiler_params=pltpu.CompilerParams(
            dimension_semantics=dim_sem,
            vmem_limit_bytes=vmem_limit,
        ),
        cost_estimate=cost,
    )(x2d, w1p, b1p, w2p, b2p)

    out = out[:, :emb]
    return out.reshape(*orig_shape[:-1], emb)


def init_dense_embedding_params(key, input_size, hidden_size, embedding_size,
                                dtype=jnp.float32):
    """Deterministic init mirroring PyTorch Linear's U(-1/sqrt(fan_in), 1/sqrt(fan_in))."""
    k1, k2, k3, k4 = jax.random.split(key, 4)
    lim1 = 1.0 / (input_size ** 0.5)
    lim2 = 1.0 / (hidden_size ** 0.5)
    # Stored as (in_features, out_features) == PyTorch weight.T
    w1 = jax.random.uniform(k1, (input_size, hidden_size), dtype, -lim1, lim1)
    b1 = jax.random.uniform(k2, (hidden_size,), dtype, -lim1, lim1)
    w2 = jax.random.uniform(k3, (hidden_size, embedding_size), dtype, -lim2, lim2)
    b2 = jax.random.uniform(k4, (embedding_size,), dtype, -lim2, lim2)
    return w1, b1, w2, b2


if __name__ == "__main__":
    # Small shapes consistent with the module's forward:
    #   input_size=16, hidden_size=32 (single hidden layer), embedding_size=8
    batch, seq, input_size, hidden_size, embedding_size = 2, 8, 16, 32, 8

    key = jax.random.PRNGKey(0)
    kx, kp = jax.random.split(key)
    x = jax.random.normal(kx, (batch, seq, input_size), dtype=jnp.float32)
    w1, b1, w2, b2 = init_dense_embedding_params(
        kp, input_size, hidden_size, embedding_size)

    def run(x_in, params, **kw):
        kw.setdefault("single_buffer_weights", True)
        try:
            return jax.block_until_ready(dense_embedding_forward(x_in, *params, **kw))
        except Exception:
            # Fallback: some jax/Mosaic versions reject single-buffered (pipeline_mode)
            # block specs; retry with the standard double-buffered pipeline.
            kw["single_buffer_weights"] = False
            return jax.block_until_ready(dense_embedding_forward(x_in, *params, **kw))

    # Fast (weights-resident) path.
    out = run(x, (w1, b1, w2, b2))
    ref = jnp.maximum(x @ w1 + b1, 0.0) @ w2 + b2
    assert out.shape == (batch, seq, embedding_size)
    assert jnp.allclose(out, ref, atol=1e-5, rtol=1e-5)

    # Hidden-tiled (reduction) path, used when weights would not fit VMEM (e.g. v7x).
    hidden_big = 256
    w1b, b1b, w2b, b2b = init_dense_embedding_params(
        jax.random.PRNGKey(1), input_size, hidden_big, embedding_size)
    out_t = run(x, (w1b, b1b, w2b, b2b),
                hidden_tile=128, max_resident_weight_bytes=0)
    ref_t = jnp.maximum(x @ w1b + b1b, 0.0) @ w2b + b2b
    assert out_t.shape == (batch, seq, embedding_size)
    assert jnp.allclose(out_t, ref_t, atol=1e-4, rtol=1e-4)

    print("KERNEL_OK")
</pallas_src>

<mosaic_0001>
module attributes {stable_mosaic.version = 11 : i64} {
  func.func @_dense_embedding_fused_kernel(%arg0: i32, %arg1: memref<16x16xf32, #tpu.memory_space<vmem>>, %arg2: memref<16x128xf32, #tpu.memory_space<vmem>>, %arg3: memref<1x128xf32, #tpu.memory_space<vmem>>, %arg4: memref<128x128xf32, #tpu.memory_space<vmem>>, %arg5: memref<1x128xf32, #tpu.memory_space<vmem>>, %arg6: memref<16x128xf32, #tpu.memory_space<vmem>>) attributes {dimension_semantics = [#tpu.dimension_semantics<parallel>], iteration_bounds = array<i64: 1>, scalar_prefetch = 0 : i64, scratch_operands = 0 : i64, tpu.core_type = #tpu.core_type<tc>, window_params = [{transform_indices = @transform_0, window_bounds = array<i64: 16, 16>}, {pipeline_mode = #tpu.pipeline_mode<synchronous>, transform_indices = @transform_1, window_bounds = array<i64: 16, 128>}, {pipeline_mode = #tpu.pipeline_mode<synchronous>, transform_indices = @transform_2, window_bounds = array<i64: 1, 128>}, {pipeline_mode = #tpu.pipeline_mode<synchronous>, transform_indices = @transform_3, window_bounds = array<i64: 128, 128>}, {pipeline_mode = #tpu.pipeline_mode<synchronous>, transform_indices = @transform_4, window_bounds = array<i64: 1, 128>}, {transform_indices = @transform_5, window_bounds = array<i64: 16, 128>}]} {
    %c0 = arith.constant 0 : index
    %c0_0 = arith.constant 0 : index
    %0 = vector.load %arg1[%c0, %c0_0] : memref<16x16xf32, #tpu.memory_space<vmem>>, vector<16x16xf32>
    %c0_1 = arith.constant 0 : index
    %c0_2 = arith.constant 0 : index
    %1 = vector.load %arg2[%c0_1, %c0_2] : memref<16x128xf32, #tpu.memory_space<vmem>>, vector<16x128xf32>
    %cst = arith.constant dense<0.000000e+00> : vector<16x128xf32>
    %2 = tpu.matmul %0, %1, %cst {dimension_numbers = #tpu.dot_dimension_numbers<[1], [0], [0], [1], [0, 0, 1, 1], [], []>} : vector<16x16xf32>, vector<16x128xf32>, vector<16x128xf32> -> vector<16x128xf32>
    %c0_3 = arith.constant 0 : index
    %c0_4 = arith.constant 0 : index
    %3 = vector.load %arg3[%c0_3, %c0_4] : memref<1x128xf32, #tpu.memory_space<vmem>>, vector<1x128xf32>
    %4 = vector.broadcast %3 : vector<1x128xf32> to vector<16x128xf32>
    %5 = arith.addf %2, %4 : vector<16x128xf32>
    %cst_5 = arith.constant 0.000000e+00 : f32
    %6 = vector.broadcast %cst_5 : f32 to vector<16x128xf32>
    %7 = arith.maximumf %5, %6 : vector<16x128xf32>
    %c0_6 = arith.constant 0 : index
    %c0_7 = arith.constant 0 : index
    %8 = vector.load %arg4[%c0_6, %c0_7] : memref<128x128xf32, #tpu.memory_space<vmem>>, vector<128x128xf32>
    %cst_8 = arith.constant dense<0.000000e+00> : vector<16x128xf32>
    %9 = tpu.matmul %7, %8, %cst_8 {dimension_numbers = #tpu.dot_dimension_numbers<[1], [0], [0], [1], [0, 0, 1, 1], [], []>} : vector<16x128xf32>, vector<128x128xf32>, vector<16x128xf32> -> vector<16x128xf32>
    %c0_9 = arith.constant 0 : index
    %c0_10 = arith.constant 0 : index
    %10 = vector.load %arg5[%c0_9, %c0_10] : memref<1x128xf32, #tpu.memory_space<vmem>>, vector<1x128xf32>
    %11 = vector.broadcast %10 : vector<1x128xf32> to vector<16x128xf32>
    %12 = arith.addf %9, %11 : vector<16x128xf32>
    %c0_11 = arith.constant 0 : index
    %c0_12 = arith.constant 0 : index
    %13 = vector.load %arg6[%c0_11, %c0_12] : memref<16x128xf32, #tpu.memory_space<vmem>>, vector<16x128xf32>
    tpu.vector_store %arg6[%c0_11, %c0_12], %12 {strides = array<i32>} : memref<16x128xf32, #tpu.memory_space<vmem>>, vector<16x128xf32>,
    return
  }
  func.func @transform_0(%arg0: i32) -> (i32, i32) {
    %c0_i32 = arith.constant 0 : i32
    %c0_i32_0 = arith.constant 0 : i32
    return %arg0, %c0_i32 : i32, i32
  }
  func.func @transform_1(%arg0: i32) -> (i32, i32) {
    %c0_i32 = arith.constant 0 : i32
    %c0_i32_0 = arith.constant 0 : i32
    %c0_i32_1 = arith.constant 0 : i32
    return %c0_i32, %c0_i32_0 : i32, i32
  }
  func.func @transform_2(%arg0: i32) -> (i32, i32) {
    %c0_i32 = arith.constant 0 : i32
    %c0_i32_0 = arith.constant 0 : i32
    %c0_i32_1 = arith.constant 0 : i32
    return %c0_i32, %c0_i32_0 : i32, i32
  }
  func.func @transform_3(%arg0: i32) -> (i32, i32) {
    %c0_i32 = arith.constant 0 : i32
    %c0_i32_0 = arith.constant 0 : i32
    %c0_i32_1 = arith.constant 0 : i32
    return %c0_i32, %c0_i32_0 : i32, i32
  }
  func.func @transform_4(%arg0: i32) -> (i32, i32) {
    %c0_i32 = arith.constant 0 : i32
    %c0_i32_0 = arith.constant 0 : i32
    %c0_i32_1 = arith.constant 0 : i32
    return %c0_i32, %c0_i32_0 : i32, i32
  }
  func.func @transform_5(%arg0: i32) -> (i32, i32) {
    %c0_i32 = arith.constant 0 : i32
    %c0_i32_0 = arith.constant 0 : i32
    return %arg0, %c0_i32 : i32, i32
  }
}

module attributes {stable_mosaic.version = 11 : i64} {
  func.func @_dense_embedding_fused_kernel(%arg0: i32, %arg1: memref<16x16xf32, #tpu.memory_space<vmem>>, %arg2: memref<16x128xf32, #tpu.memory_space<vmem>>, %arg3: memref<1x128xf32, #tpu.memory_space<vmem>>, %arg4: memref<128x128xf32, #tpu.memory_space<vmem>>, %arg5: memref<1x128xf32, #tpu.memory_space<vmem>>, %arg6: memref<16x128xf32, #tpu.memory_space<vmem>>) attributes {dimension_semantics = [#tpu.dimension_semantics<parallel>], iteration_bounds = array<i64: 1>, scalar_prefetch = 0 : i64, scratch_operands = 0 : i64, tpu.core_type = #tpu.core_type<tc>, window_params = [{transform_indices = @transform_0, window_bounds = array<i64: 16, 16>}, {pipeline_mode = #tpu.pipeline_mode<synchronous>, transform_indices = @transform_1, window_bounds = array<i64: 16, 128>}, {pipeline_mode = #tpu.pipeline_mode<synchronous>, transform_indices = @transform_2, window_bounds = array<i64: 1, 128>}, {pipeline_mode = #tpu.pipeline_mode<synchronous>, transform_indices = @transform_3, window_bounds = array<i64: 128, 128>}, {pipeline_mode = #tpu.pipeline_mode<synchronous>, transform_indices = @transform_4, window_bounds = array<i64: 1, 128>}, {transform_indices = @transform_5, window_bounds = array<i64: 16, 128>}]} {
    %c0 = arith.constant 0 : index
    %c0_0 = arith.constant 0 : index
    %0 = vector.load %arg1[%c0, %c0_0] : memref<16x16xf32, #tpu.memory_space<vmem>>, vector<16x16xf32>
    %c0_1 = arith.constant 0 : index
    %c0_2 = arith.constant 0 : index
    %1 = vector.load %arg2[%c0_1, %c0_2] : memref<16x128xf32, #tpu.memory_space<vmem>>, vector<16x128xf32>
    %cst = arith.constant dense<0.000000e+00> : vector<16x128xf32>
    %2 = tpu.matmul %0, %1, %cst {dimension_numbers = #tpu.dot_dimension_numbers<[1], [0], [0], [1], [0, 0, 1, 1], [], []>} : vector<16x16xf32>, vector<16x128xf32>, vector<16x128xf32> -> vector<16x128xf32>
    %c0_3 = arith.constant 0 : index
    %c0_4 = arith.constant 0 : index
    %3 = vector.load %arg3[%c0_3, %c0_4] : memref<1x128xf32, #tpu.memory_space<vmem>>, vector<1x128xf32>
    %4 = vector.broadcast %3 : vector<1x128xf32> to vector<16x128xf32>
    %5 = arith.addf %2, %4 : vector<16x128xf32>
    %cst_5 = arith.constant 0.000000e+00 : f32
    %6 = vector.broadcast %cst_5 : f32 to vector<16x128xf32>
    %7 = arith.maximumf %5, %6 : vector<16x128xf32>
    %c0_6 = arith.constant 0 : index
    %c0_7 = arith.constant 0 : index
    %8 = vector.load %arg4[%c0_6, %c0_7] : memref<128x128xf32, #tpu.memory_space<vmem>>, vector<128x128xf32>
    %cst_8 = arith.constant dense<0.000000e+00> : vector<16x128xf32>
    %9 = tpu.matmul %7, %8, %cst_8 {dimension_numbers = #tpu.dot_dimension_numbers<[1], [0], [0], [1], [0, 0, 1, 1], [], []>} : vector<16x128xf32>, vector<128x128xf32>, vector<16x128xf32> -> vector<16x128xf32>
    %c0_9 = arith.constant 0 : index
    %c0_10 = arith.constant 0 : index
    %10 = vector.load %arg5[%c0_9, %c0_10] : memref<1x128xf32, #tpu.memory_space<vmem>>, vector<1x128xf32>
    %11 = vector.broadcast %10 : vector<1x128xf32> to vector<16x128xf32>
    %12 = arith.addf %9, %11 : vector<16x128xf32>
    %c0_11 = arith.constant 0 : index
    %c0_12 = arith.constant 0 : index
    %13 = vector.load %arg6[%c0_11, %c0_12] : memref<16x128xf32, #tpu.memory_space<vmem>>, vector<16x128xf32>
    tpu.vector_store %arg6[%c0_11, %c0_12], %12 {strides = array<i32>} : memref<16x128xf32, #tpu.memory_space<vmem>>, vector<16x128xf32>,
    return
  }
  func.func @transform_0(%arg0: i32) -> (i32, i32) {
    %c0_i32 = arith.constant 0 : i32
    %c0_i32_0 = arith.constant 0 : i32
    return %arg0, %c0_i32 : i32, i32
  }
  func.func @transform_1(%arg0: i32) -> (i32, i32) {
    %c0_i32 = arith.constant 0 : i32
    %c0_i32_0 = arith.constant 0 : i32
    %c0_i32_1 = arith.constant 0 : i32
    return %c0_i32, %c0_i32_0 : i32, i32
  }
  func.func @transform_2(%arg0: i32) -> (i32, i32) {
    %c0_i32 = arith.constant 0 : i32
    %c0_i32_0 = arith.constant 0 : i32
    %c0_i32_1 = arith.constant 0 : i32
    return %c0_i32, %c0_i32_0 : i32, i32
  }
  func.func @transform_3(%arg0: i32) -> (i32, i32) {
    %c0_i32 = arith.constant 0 : i32
    %c0_i32_0 = arith.constant 0 : i32
    %c0_i32_1 = arith.constant 0 : i32
    return %c0_i32, %c0_i32_0 : i32, i32
  }
  func.func @transform_4(%arg0: i32) -> (i32, i32) {
    %c0_i32 = arith.constant 0 : i32
    %c0_i32_0 = arith.constant 0 : i32
    %c0_i32_1 = arith.constant 0 : i32
    return %c0_i32, %c0_i32_0 : i32, i32
  }
  func.func @transform_5(%arg0: i32) -> (i32, i32) {
    %c0_i32 = arith.constant 0 : i32
    %c0_i32_0 = arith.constant 0 : i32
    return %arg0, %c0_i32 : i32, i32
  }
}

</mosaic_0001>

<llo_original>
// kernel: dense_embedding_forward.1
$region0: #{dense_embedding_forward.1}
  #allocation0 [shape = 'u32[]', space=smem, size = 0x4, offset = 0x4, fixed_abs, tag = 'smem constant byte address 0x4 - core index']
  #allocation1 [shape = 'u32[144,128]{1,0:T(1,128)}', space=vmem, size = 0x12000, scoped, tag = 'internal scratch']
  %s0 = inlined_call_operand.vmem [shape: f32[16,16], index: 0, kind: input, shape index: {}]
  %s1 = inlined_call_operand.vmem [shape: f32[16,128], index: 1, kind: input, shape index: {}]
  %s2 = inlined_call_operand.vmem [shape: f32[1,128], index: 2, kind: input, shape index: {}]
  %s3 = inlined_call_operand.vmem [shape: f32[128,128], index: 3, kind: input, shape index: {}]
  %s4 = inlined_call_operand.vmem [shape: f32[1,128], index: 4, kind: input, shape index: {}]
  %s5 = inlined_call_operand.vmem [shape: f32[16,128], index: 5, kind: output, shape index: {}]
  %s6 = sld [smem:[#allocation0]]
  $region30: #{dense_embedding_forward.1} parent=0
    _
  %s8 = ssub.s32 1, %s6
  %s9 = scalar_select 0, %s8, %s6
  // Predicated region
  $region2: #{dense_embedding_forward.1} parent=0 // pred_check
    _
  $region3: #{dense_embedding_forward.1} parent=0 // pred_check_branch
    %11 = sbr.rel (0) target = $region5
  $region4: #{dense_embedding_forward.1} parent=0 // pred_region
    _
  $region5: #{dense_embedding_forward.1} parent=0 // pred_fallthru
    _
  // Predicated region
  $region6: #{dense_embedding_forward.1} parent=0 // pred_check
    _
  $region7: #{dense_embedding_forward.1} parent=0 // pred_check_branch
    %13 = sbr.rel (0) target = $region9
  $region8: #{dense_embedding_forward.1} parent=0 // pred_region
    _
  $region9: #{dense_embedding_forward.1} parent=0 // pred_fallthru
    _
  // Predicated region
  $region10: #{dense_embedding_forward.1} parent=0 // pred_check
    _
  $region11: #{dense_embedding_forward.1} parent=0 // pred_check_branch
    %15 = sbr.rel (0) target = $region13
  $region12: #{dense_embedding_forward.1} parent=0 // pred_region
    _
  $region13: #{dense_embedding_forward.1} parent=0 // pred_fallthru
    _
  // Predicated region
  $region14: #{dense_embedding_forward.1} parent=0 // pred_check
    _
  $region15: #{dense_embedding_forward.1} parent=0 // pred_check_branch
    %17 = sbr.rel (0) target = $region17
  $region16: #{dense_embedding_forward.1} parent=0 // pred_region
    _
  $region17: #{dense_embedding_forward.1} parent=0 // pred_fallthru
    _
  // Predicated region
  $region18: #{dense_embedding_forward.1} parent=0 // pred_check
    _
  $region19: #{dense_embedding_forward.1} parent=0 // pred_check_branch
    %19 = sbr.rel (0) target = $region21
  $region20: #{dense_embedding_forward.1} parent=0 // pred_region
    _
  $region21: #{dense_embedding_forward.1} parent=0 // pred_fallthru
    _
  %v20 = vld [vmem:[%s0] sm:$0xff]
  %v21 = vld [vmem:[%s0 + $0x8] sm:$0xff]
  %v22 = vld [vmem:[%s1] sm:$0xff]
  %v23 = vld [vmem:[%s1 + $0x8] sm:$0xff]
  %v24 = vld [vmem:[%s2] sm:$0x1]
  %v26 = vlaneseq
  %v27 = vshrl.u32 %v26, 7
  %v28 = vsub.s32 0, %v27
  %v29 = vrot.slane %v24, %v28
  %vm31 = vcmask 130048
  %v33 = vsel %vm31, %v20, 0
  %v36 = vsel %vm31, %v21, 0
  %38 = vmatprep.subr.mxu0 0.0
  %39 = vmatpush1.msra.mxu0 0.0
  %40 = vmatprep.subr.mxu0 0.0
  %41 = vmatpush1.msra.mxu0 0.0
  %42 = vmatprep.subr.mxu0 0.0
  %43 = vmatpush1.msra.mxu0 0.0
  %44 = vmatprep.subr.mxu0 0.0
  %45 = vmatpush1.msra.mxu0 0.0
  %46 = vmatprep.subr.mxu0 0.0
  %47 = vmatpush1.msra.mxu0 0.0
  %48 = vmatprep.subr.mxu0 0.0
  %49 = vmatpush1.msra.mxu0 0.0
  %50 = vmatprep.subr.mxu0 0.0
  %51 = vmatpush1.msra.mxu0 0.0
  %52 = vmatprep.subr.mxu0 0.0
  %53 = vmatpush1.msra.mxu0 0.0
  %54 = vmatprep.subr.mxu0 0.0
  %55 = vmatpush1.msra.mxu0 0.0
  %56 = vmatprep.subr.mxu0 0.0
  %57 = vmatpush1.msra.mxu0 0.0
  %58 = vmatprep.subr.mxu0 0.0
  %59 = vmatpush1.msra.mxu0 0.0
  %60 = vmatprep.subr.mxu0 0.0
  %61 = vmatpush1.msra.mxu0 0.0
  %62 = vmatprep.subr.mxu0 0.0
  %63 = vmatpush1.msra.mxu0 0.0
  %64 = vmatprep.subr.mxu0 0.0
  %65 = vmatpush1.msra.mxu0 0.0
  %66 = vmatprep.subr.mxu0 0.0
  %67 = vmatpush1.msra.mxu0 %v23
  %68 = vmatprep.subr.mxu0 0.0
  %69 = vmatpush1.msra.mxu0 %v22
  %70 = vmatprep.subr.mxu0 0.0
  %71 = vmatpush2.msra.mxu0 0.0
  %72 = vmatprep.subr.mxu0 0.0
  %73 = vmatpush2.msra.mxu0 0.0
  %74 = vmatprep.subr.mxu0 0.0
  %75 = vmatpush2.msra.mxu0 0.0
  %76 = vmatprep.subr.mxu0 0.0
  %77 = vmatpush2.msra.mxu0 0.0
  %78 = vmatprep.subr.mxu0 0.0
  %79 = vmatpush2.msra.mxu0 0.0
  %80 = vmatprep.subr.mxu0 0.0
  %81 = vmatpush2.msra.mxu0 0.0
  %82 = vmatprep.subr.mxu0 0.0
  %83 = vmatpush2.msra.mxu0 0.0
  %84 = vmatprep.subr.mxu0 0.0
  %85 = vmatpush2.msra.mxu0 0.0
  %86 = vmatprep.subr.mxu0 0.0
  %87 = vmatpush2.msra.mxu0 0.0
  %88 = vmatprep.subr.mxu0 0.0
  %89 = vmatpush2.msra.mxu0 0.0
  %90 = vmatprep.subr.mxu0 0.0
  %91 = vmatpush2.msra.mxu0 0.0
  %92 = vmatprep.subr.mxu0 0.0
  %93 = vmatpush2.msra.mxu0 0.0
  %94 = vmatprep.subr.mxu0 0.0
  %95 = vmatpush2.msra.mxu0 0.0
  %96 = vmatprep.subr.mxu0 0.0
  %97 = vmatpush2.msra.mxu0 0.0
  %98 = vmatprep.subr.mxu0 0.0
  %99 = vmatpush2.msra.mxu0 0.0
  %100 = vmatprep.subr.mxu0 0.0
  %101 = vmatpush2.msra.mxu0 0.0
  %102 = vmatprep.mubr.f32.mxu0 0.0
  %103 = vmatmul.mubr.f32.gmra.mxu0 %v33
  %v104 = vpop.f32.mrf.mxu0
  %v105 = vadd.f32 %v29, %v104
  %v106 = vpop.f32.mrf.mxu0
  %107 = vmatprep.mubr.f32.mxu0 0.0
  %108 = vmatmul.mubr.f32.gmra.mxu0 %v36
  %v109 = vpop.f32.mrf.mxu0
  %v110 = vadd.f32 %v29, %v109
  %v111 = vpop.f32.mrf.mxu0
  %112 = vdwg.mxu0
  %v113 = vmax.f32 %v105, 0.0
  %v114 = vmax.f32 %v110, 0.0
  %v115 = vld [vmem:[%s3] sm:$0xff]
  %v116 = vld [vmem:[%s3 + $0x8] sm:$0xff]
  %v117 = vld [vmem:[%s3 + $0x10] sm:$0xff]
  %v118 = vld [vmem:[%s3 + $0x18] sm:$0xff]
  %v119 = vld [vmem:[%s3 + $0x20] sm:$0xff]
  %v120 = vld [vmem:[%s3 + $0x28] sm:$0xff]
  %v121 = vld [vmem:[%s3 + $0x30] sm:$0xff]
  %v122 = vld [vmem:[%s3 + $0x38] sm:$0xff]
  %v123 = vld [vmem:[%s3 + $0x40] sm:$0xff]
  %v124 = vld [vmem:[%s3 + $0x48] sm:$0xff]
  %v125 = vld [vmem:[%s3 + $0x50] sm:$0xff]
  %v126 = vld [vmem:[%s3 + $0x58] sm:$0xff]
  %v127 = vld [vmem:[%s3 + $0x60] sm:$0xff]
  %v128 = vld [vmem:[%s3 + $0x68] sm:$0xff]
  %v129 = vld [vmem:[%s3 + $0x70] sm:$0xff]
  %v130 = vld [vmem:[%s3 + $0x78] sm:$0xff]
  %v131 = vld [vmem:[%s4] sm:$0x1]
  %v133 = vlaneseq
  %v134 = vshrl.u32 %v133, 7
  %v135 = vsub.s32 0, %v134
  %v136 = vrot.slane %v131, %v135
  %138 = vmatprep.subr.mxu0 0.0
  %139 = vmatpush1.msra.mxu0 %v130
  %140 = vmatprep.subr.mxu0 0.0
  %141 = vmatpush1.msra.mxu0 %v129
  %142 = vmatprep.subr.mxu0 0.0
  %143 = vmatpush1.msra.mxu0 %v128
  %144 = vmatprep.subr.mxu0 0.0
  %145 = vmatpush1.msra.mxu0 %v127
  %146 = vmatprep.subr.mxu0 0.0
  %147 = vmatpush1.msra.mxu0 %v126
  %148 = vmatprep.subr.mxu0 0.0
  %149 = vmatpush1.msra.mxu0 %v125
  %150 = vmatprep.subr.mxu0 0.0
  %151 = vmatpush1.msra.mxu0 %v124
  %152 = vmatprep.subr.mxu0 0.0
  %153 = vmatpush1.msra.mxu0 %v123
  %154 = vmatprep.subr.mxu0 0.0
  %155 = vmatpush1.msra.mxu0 %v122
  %156 = vmatprep.subr.mxu0 0.0
  %157 = vmatpush1.msra.mxu0 %v121
  %158 = vmatprep.subr.mxu0 0.0
  %159 = vmatpush1.msra.mxu0 %v120
  %160 = vmatprep.subr.mxu0 0.0
  %161 = vmatpush1.msra.mxu0 %v119
  %162 = vmatprep.subr.mxu0 0.0
  %163 = vmatpush1.msra.mxu0 %v118
  %164 = vmatprep.subr.mxu0 0.0
  %165 = vmatpush1.msra.mxu0 %v117
  %166 = vmatprep.subr.mxu0 0.0
  %167 = vmatpush1.msra.mxu0 %v116
  %168 = vmatprep.subr.mxu0 0.0
  %169 = vmatpush1.msra.mxu0 %v115
  %170 = vmatprep.subr.mxu0 0.0
  %171 = vmatpush2.msra.mxu0 0.0
  %172 = vmatprep.subr.mxu0 0.0
  %173 = vmatpush2.msra.mxu0 0.0
  %174 = vmatprep.subr.mxu0 0.0
  %175 = vmatpush2.msra.mxu0 0.0
  %176 = vmatprep.subr.mxu0 0.0
  %177 = vmatpush2.msra.mxu0 0.0
  %178 = vmatprep.subr.mxu0 0.0
  %179 = vmatpush2.msra.mxu0 0.0
  %180 = vmatprep.subr.mxu0 0.0
  %181 = vmatpush2.msra.mxu0 0.0
  %182 = vmatprep.subr.mxu0 0.0
  %183 = vmatpush2.msra.mxu0 0.0
  %184 = vmatprep.subr.mxu0 0.0
  %185 = vmatpush2.msra.mxu0 0.0
  %186 = vmatprep.subr.mxu0 0.0
  %187 = vmatpush2.msra.mxu0 0.0
  %188 = vmatprep.subr.mxu0 0.0
  %189 = vmatpush2.msra.mxu0 0.0
  %190 = vmatprep.subr.mxu0 0.0
  %191 = vmatpush2.msra.mxu0 0.0
  %192 = vmatprep.subr.mxu0 0.0
  %193 = vmatpush2.msra.mxu0 0.0
  %194 = vmatprep.subr.mxu0 0.0
  %195 = vmatpush2.msra.mxu0 0.0
  %196 = vmatprep.subr.mxu0 0.0
  %197 = vmatpush2.msra.mxu0 0.0
  %198 = vmatprep.subr.mxu0 0.0
  %199 = vmatpush2.msra.mxu0 0.0
  %200 = vmatprep.subr.mxu0 0.0
  %201 = vmatpush2.msra.mxu0 0.0
  %202 = vmatprep.mubr.f32.mxu0 0.0
  %203 = vmatmul.mubr.f32.gmra.mxu0 %v113
  %v204 = vpop.f32.mrf.mxu0
  %v205 = vadd.f32 %v136, %v204
  %v206 = vpop.f32.mrf.mxu0
  %207 = vmatprep.mubr.f32.mxu0 0.0
  %208 = vmatmul.mubr.f32.gmra.mxu0 %v114
  %v209 = vpop.f32.mrf.mxu0
  %v210 = vadd.f32 %v136, %v209
  %v211 = vpop.f32.mrf.mxu0
  %212 = vdwg.mxu0
  %213 = vst [vmem:[%s5] sm:$0xff] %v205
  %214 = vst [vmem:[%s5 + $0x8] sm:$0xff] %v210
  // Predicated region
  $region22: #{dense_embedding_forward.1} parent=0 // pred_check
    _
  $region23: #{dense_embedding_forward.1} parent=0 // pred_check_branch
    %216 = sbr.rel (0) target = $region25
  $region24: #{dense_embedding_forward.1} parent=0 // pred_region
    _
  $region25: #{dense_embedding_forward.1} parent=0 // pred_fallthru
    _
  // Predicated region
  $region26: #{dense_embedding_forward.1} parent=0 // pred_check
    _
  $region27: #{dense_embedding_forward.1} parent=0 // pred_check_branch
    %218 = sbr.rel (0) target = $region29
  $region28: #{dense_embedding_forward.1} parent=0 // pred_region
    _
  $region29: #{dense_embedding_forward.1} parent=0 // pred_fallthru
    _

// kernel: dense_embedding_forward.1
$region0: #{dense_embedding_forward.1}
  #allocation0 [shape = 'u32[]', space=smem, size = 0x4, offset = 0x4, fixed_abs, tag = 'smem constant byte address 0x4 - core index']
  #allocation1 [shape = 'u32[144,128]{1,0:T(1,128)}', space=vmem, size = 0x12000, scoped, tag = 'internal scratch']
  %s0 = inlined_call_operand.vmem [shape: f32[16,16], index: 0, kind: input, shape index: {}]
  %s1 = inlined_call_operand.vmem [shape: f32[16,128], index: 1, kind: input, shape index: {}]
  %s2 = inlined_call_operand.vmem [shape: f32[1,128], index: 2, kind: input, shape index: {}]
  %s3 = inlined_call_operand.vmem [shape: f32[128,128], index: 3, kind: input, shape index: {}]
  %s4 = inlined_call_operand.vmem [shape: f32[1,128], index: 4, kind: input, shape index: {}]
  %s5 = inlined_call_operand.vmem [shape: f32[16,128], index: 5, kind: output, shape index: {}]
  %s6 = sld [smem:[#allocation0]]
  $region30: #{dense_embedding_forward.1} parent=0
    _
  %s8 = ssub.s32 1, %s6
  %s9 = scalar_select 0, %s8, %s6
  // Predicated region
  $region2: #{dense_embedding_forward.1} parent=0 // pred_check
    _
  $region3: #{dense_embedding_forward.1} parent=0 // pred_check_branch
    %11 = sbr.rel (0) target = $region5
  $region4: #{dense_embedding_forward.1} parent=0 // pred_region
    _
  $region5: #{dense_embedding_forward.1} parent=0 // pred_fallthru
    _
  // Predicated region
  $region6: #{dense_embedding_forward.1} parent=0 // pred_check
    _
  $region7: #{dense_embedding_forward.1} parent=0 // pred_check_branch
    %13 = sbr.rel (0) target = $region9
  $region8: #{dense_embedding_forward.1} parent=0 // pred_region
    _
  $region9: #{dense_embedding_forward.1} parent=0 // pred_fallthru
    _
  // Predicated region
  $region10: #{dense_embedding_forward.1} parent=0 // pred_check
    _
  $region11: #{dense_embedding_forward.1} parent=0 // pred_check_branch
    %15 = sbr.rel (0) target = $region13
  $region12: #{dense_embedding_forward.1} parent=0 // pred_region
    _
  $region13: #{dense_embedding_forward.1} parent=0 // pred_fallthru
    _
  // Predicated region
  $region14: #{dense_embedding_forward.1} parent=0 // pred_check
    _
  $region15: #{dense_embedding_forward.1} parent=0 // pred_check_branch
    %17 = sbr.rel (0) target = $region17
  $region16: #{dense_embedding_forward.1} parent=0 // pred_region
    _
  $region17: #{dense_embedding_forward.1} parent=0 // pred_fallthru
    _
  // Predicated region
  $region18: #{dense_embedding_forward.1} parent=0 // pred_check
    _
  $region19: #{dense_embedding_forward.1} parent=0 // pred_check_branch
    %19 = sbr.rel (0) target = $region21
  $region20: #{dense_embedding_forward.1} parent=0 // pred_region
    _
  $region21: #{dense_embedding_forward.1} parent=0 // pred_fallthru
    _
  %v20 = vld [vmem:[%s0] sm:$0xff]
  %v21 = vld [vmem:[%s0 + $0x8] sm:$0xff]
  %v22 = vld [vmem:[%s1] sm:$0xff]
  %v23 = vld [vmem:[%s1 + $0x8] sm:$0xff]
  %v24 = vld [vmem:[%s2] sm:$0x1]
  %v26 = vlaneseq
  %v27 = vshrl.u32 %v26, 7
  %v28 = vsub.s32 0, %v27
  %v29 = vrot.slane %v24, %v28
  %vm31 = vcmask 130048
  %v33 = vsel %vm31, %v20, 0
  %v36 = vsel %vm31, %v21, 0
  %38 = vmatprep.subr.mxu0 0.0
  %39 = vmatpush1.msra.mxu0 0.0
  %40 = vmatprep.subr.mxu0 0.0
  %41 = vmatpush1.msra.mxu0 0.0
  %42 = vmatprep.subr.mxu0 0.0
  %43 = vmatpush1.msra.mxu0 0.0
  %44 = vmatprep.subr.mxu0 0.0
  %45 = vmatpush1.msra.mxu0 0.0
  %46 = vmatprep.subr.mxu0 0.0
  %47 = vmatpush1.msra.mxu0 0.0
  %48 = vmatprep.subr.mxu0 0.0
  %49 = vmatpush1.msra.mxu0 0.0
  %50 = vmatprep.subr.mxu0 0.0
  %51 = vmatpush1.msra.mxu0 0.0
  %52 = vmatprep.subr.mxu0 0.0
  %53 = vmatpush1.msra.mxu0 0.0
  %54 = vmatprep.subr.mxu0 0.0
  %55 = vmatpush1.msra.mxu0 0.0
  %56 = vmatprep.subr.mxu0 0.0
  %57 = vmatpush1.msra.mxu0 0.0
  %58 = vmatprep.subr.mxu0 0.0
  %59 = vmatpush1.msra.mxu0 0.0
  %60 = vmatprep.subr.mxu0 0.0
  %61 = vmatpush1.msra.mxu0 0.0
  %62 = vmatprep.subr.mxu0 0.0
  %63 = vmatpush1.msra.mxu0 0.0
  %64 = vmatprep.subr.mxu0 0.0
  %65 = vmatpush1.msra.mxu0 0.0
  %66 = vmatprep.subr.mxu0 0.0
  %67 = vmatpush1.msra.mxu0 %v23
  %68 = vmatprep.subr.mxu0 0.0
  %69 = vmatpush1.msra.mxu0 %v22
  %70 = vmatprep.subr.mxu0 0.0
  %71 = vmatpush2.msra.mxu0 0.0
  %72 = vmatprep.subr.mxu0 0.0
  %73 = vmatpush2.msra.mxu0 0.0
  %74 = vmatprep.subr.mxu0 0.0
  %75 = vmatpush2.msra.mxu0 0.0
  %76 = vmatprep.subr.mxu0 0.0
  %77 = vmatpush2.msra.mxu0 0.0
  %78 = vmatprep.subr.mxu0 0.0
  %79 = vmatpush2.msra.mxu0 0.0
  %80 = vmatprep.subr.mxu0 0.0
  %81 = vmatpush2.msra.mxu0 0.0
  %82 = vmatprep.subr.mxu0 0.0
  %83 = vmatpush2.msra.mxu0 0.0
  %84 = vmatprep.subr.mxu0 0.0
  %85 = vmatpush2.msra.mxu0 0.0
  %86 = vmatprep.subr.mxu0 0.0
  %87 = vmatpush2.msra.mxu0 0.0
  %88 = vmatprep.subr.mxu0 0.0
  %89 = vmatpush2.msra.mxu0 0.0
  %90 = vmatprep.subr.mxu0 0.0
  %91 = vmatpush2.msra.mxu0 0.0
  %92 = vmatprep.subr.mxu0 0.0
  %93 = vmatpush2.msra.mxu0 0.0
  %94 = vmatprep.subr.mxu0 0.0
  %95 = vmatpush2.msra.mxu0 0.0
  %96 = vmatprep.subr.mxu0 0.0
  %97 = vmatpush2.msra.mxu0 0.0
  %98 = vmatprep.subr.mxu0 0.0
  %99 = vmatpush2.msra.mxu0 0.0
  %100 = vmatprep.subr.mxu0 0.0
  %101 = vmatpush2.msra.mxu0 0.0
  %102 = vmatprep.mubr.f32.mxu0 0.0
  %103 = vmatmul.mubr.f32.gmra.mxu0 %v33
  %v104 = vpop.f32.mrf.mxu0
  %v105 = vadd.f32 %v29, %v104
  %v106 = vpop.f32.mrf.mxu0
  %107 = vmatprep.mubr.f32.mxu0 0.0
  %108 = vmatmul.mubr.f32.gmra.mxu0 %v36
  %v109 = vpop.f32.mrf.mxu0
  %v110 = vadd.f32 %v29, %v109
  %v111 = vpop.f32.mrf.mxu0
  %112 = vdwg.mxu0
  %v113 = vmax.f32 %v105, 0.0
  %v114 = vmax.f32 %v110, 0.0
  %v115 = vld [vmem:[%s3] sm:$0xff]
  %v116 = vld [vmem:[%s3 + $0x8] sm:$0xff]
  %v117 = vld [vmem:[%s3 + $0x10] sm:$0xff]
  %v118 = vld [vmem:[%s3 + $0x18] sm:$0xff]
  %v119 = vld [vmem:[%s3 + $0x20] sm:$0xff]
  %v120 = vld [vmem:[%s3 + $0x28] sm:$0xff]
  %v121 = vld [vmem:[%s3 + $0x30] sm:$0xff]
  %v122 = vld [vmem:[%s3 + $0x38] sm:$0xff]
  %v123 = vld [vmem:[%s3 + $0x40] sm:$0xff]
  %v124 = vld [vmem:[%s3 + $0x48] sm:$0xff]
  %v125 = vld [vmem:[%s3 + $0x50] sm:$0xff]
  %v126 = vld [vmem:[%s3 + $0x58] sm:$0xff]
  %v127 = vld [vmem:[%s3 + $0x60] sm:$0xff]
  %v128 = vld [vmem:[%s3 + $0x68] sm:$0xff]
  %v129 = vld [vmem:[%s3 + $0x70] sm:$0xff]
  %v130 = vld [vmem:[%s3 + $0x78] sm:$0xff]
  %v131 = vld [vmem:[%s4] sm:$0x1]
  %v133 = vlaneseq
  %v134 = vshrl.u32 %v133, 7
  %v135 = vsub.s32 0, %v134
  %v136 = vrot.slane %v131, %v135
  %138 = vmatprep.subr.mxu0 0.0
  %139 = vmatpush1.msra.mxu0 %v130
  %140 = vmatprep.subr.mxu0 0.0
  %141 = vmatpush1.msra.mxu0 %v129
  %142 = vmatprep.subr.mxu0 0.0
  %143 = vmatpush1.msra.mxu0 %v128
  %144 = vmatprep.subr.mxu0 0.0
  %145 = vmatpush1.msra.mxu0 %v127
  %146 = vmatprep.subr.mxu0 0.0
  %147 = vmatpush1.msra.mxu0 %v126
  %148 = vmatprep.subr.mxu0 0.0
  %149 = vmatpush1.msra.mxu0 %v125
  %150 = vmatprep.subr.mxu0 0.0
  %151 = vmatpush1.msra.mxu0 %v124
  %152 = vmatprep.subr.mxu0 0.0
  %153 = vmatpush1.msra.mxu0 %v123
  %154 = vmatprep.subr.mxu0 0.0
  %155 = vmatpush1.msra.mxu0 %v122
  %156 = vmatprep.subr.mxu0 0.0
  %157 = vmatpush1.msra.mxu0 %v121
  %158 = vmatprep.subr.mxu0 0.0
  %159 = vmatpush1.msra.mxu0 %v120
  %160 = vmatprep.subr.mxu0 0.0
  %161 = vmatpush1.msra.mxu0 %v119
  %162 = vmatprep.subr.mxu0 0.0
  %163 = vmatpush1.msra.mxu0 %v118
  %164 = vmatprep.subr.mxu0 0.0
  %165 = vmatpush1.msra.mxu0 %v117
  %166 = vmatprep.subr.mxu0 0.0
  %167 = vmatpush1.msra.mxu0 %v116
  %168 = vmatprep.subr.mxu0 0.0
  %169 = vmatpush1.msra.mxu0 %v115
  %170 = vmatprep.subr.mxu0 0.0
  %171 = vmatpush2.msra.mxu0 0.0
  %172 = vmatprep.subr.mxu0 0.0
  %173 = vmatpush2.msra.mxu0 0.0
  %174 = vmatprep.subr.mxu0 0.0
  %175 = vmatpush2.msra.mxu0 0.0
  %176 = vmatprep.subr.mxu0 0.0
  %177 = vmatpush2.msra.mxu0 0.0
  %178 = vmatprep.subr.mxu0 0.0
  %179 = vmatpush2.msra.mxu0 0.0
  %180 = vmatprep.subr.mxu0 0.0
  %181 = vmatpush2.msra.mxu0 0.0
  %182 = vmatprep.subr.mxu0 0.0
  %183 = vmatpush2.msra.mxu0 0.0
  %184 = vmatprep.subr.mxu0 0.0
  %185 = vmatpush2.msra.mxu0 0.0
  %186 = vmatprep.subr.mxu0 0.0
  %187 = vmatpush2.msra.mxu0 0.0
  %188 = vmatprep.subr.mxu0 0.0
  %189 = vmatpush2.msra.mxu0 0.0
  %190 = vmatprep.subr.mxu0 0.0
  %191 = vmatpush2.msra.mxu0 0.0
  %192 = vmatprep.subr.mxu0 0.0
  %193 = vmatpush2.msra.mxu0 0.0
  %194 = vmatprep.subr.mxu0 0.0
  %195 = vmatpush2.msra.mxu0 0.0
  %196 = vmatprep.subr.mxu0 0.0
  %197 = vmatpush2.msra.mxu0 0.0
  %198 = vmatprep.subr.mxu0 0.0
  %199 = vmatpush2.msra.mxu0 0.0
  %200 = vmatprep.subr.mxu0 0.0
  %201 = vmatpush2.msra.mxu0 0.0
  %202 = vmatprep.mubr.f32.mxu0 0.0
  %203 = vmatmul.mubr.f32.gmra.mxu0 %v113
  %v204 = vpop.f32.mrf.mxu0
  %v205 = vadd.f32 %v136, %v204
  %v206 = vpop.f32.mrf.mxu0
  %207 = vmatprep.mubr.f32.mxu0 0.0
  %208 = vmatmul.mubr.f32.gmra.mxu0 %v114
  %v209 = vpop.f32.mrf.mxu0
  %v210 = vadd.f32 %v136, %v209
  %v211 = vpop.f32.mrf.mxu0
  %212 = vdwg.mxu0
  %213 = vst [vmem:[%s5] sm:$0xff] %v205
  %214 = vst [vmem:[%s5 + $0x8] sm:$0xff] %v210
  // Predicated region
  $region22: #{dense_embedding_forward.1} parent=0 // pred_check
    _
  $region23: #{dense_embedding_forward.1} parent=0 // pred_check_branch
    %216 = sbr.rel (0) target = $region25
  $region24: #{dense_embedding_forward.1} parent=0 // pred_region
    _
  $region25: #{dense_embedding_forward.1} parent=0 // pred_fallthru
    _
  // Predicated region
  $region26: #{dense_embedding_forward.1} parent=0 // pred_check
    _
  $region27: #{dense_embedding_forward.1} parent=0 // pred_check_branch
    %218 = sbr.rel (0) target = $region29
  $region28: #{dense_embedding_forward.1} parent=0 // pred_region
    _
  $region29: #{dense_embedding_forward.1} parent=0 // pred_fallthru
    _

</llo_original>
